<compile_context>
chip_gen: v6e
topology: v6e:2x2x1
jax: 0.10.0
libtpu: 0.0.40
codegen_flags: <defaults>
</compile_context>

<pallas_src>
import math

import jax
import jax.numpy as jnp
from jax.experimental import pallas as pl
from jax.experimental.pallas import tpu as pltpu

DIAGONAL_KERNELS_COUNT = 5 * 4
HORIZONTAL_KERNELS_COUNT = 5 * 2
INTERESTING_STATES_COUNT = 4
VERTICAL_KERNELS_COUNT = 5 * 2

_VMEM_BUDGET_BYTES = 40 * 1024 * 1024   # tile-derivation budget (v7x 64 MiB safe)
_VMEM_LIMIT_BYTES = 48 * 1024 * 1024    # scoped-VMEM request, < v7x physical w/ headroom


def single_layer_value_input_size(field_h: int, field_w: int) -> int:
    plain = field_h * field_w * INTERESTING_STATES_COUNT
    horiz = field_h * (field_w - 1) * HORIZONTAL_KERNELS_COUNT
    vert = (field_h - 1) * field_w * VERTICAL_KERNELS_COUNT
    diag = (field_h - 1) * (field_w - 1) * DIAGONAL_KERNELS_COUNT
    return plain + horiz + vert + diag


def _round_up(x: int, m: int) -> int:
    return -(-x // m) * m


def _value_kernel(x_ref, w1_ref, b1_ref, w2_ref, b2_ref, o_ref):
    # Cast the streamed x tile on-chip (VPU), right before the MXU matmul; the
    # HBM stream stays in the caller's dtype and is read exactly once.
    x = x_ref[...].astype(w1_ref.dtype)
    # Hidden layer on the MXU: (TB, K) @ (K, Hp) -> f32 accumulate.
    h = jnp.dot(x, w1_ref[...], preferred_element_type=jnp.float32)
    # Bias + ReLU on the VPU.  Dropout(p=0.3) in eval/inference mode == identity.
    h = jnp.maximum(h + b1_ref[...], 0.0)
    # (Hp -> 1) head as a tiny MXU contraction producing a lane-dense row:
    #   w2 (1, Hp) . h (TB, Hp)^T  ->  (1, TB)
    row = jax.lax.dot_general(
        w2_ref[...], h,
        dimension_numbers=(((1,), (1,)), ((), ())),
        preferred_element_type=jnp.float32)
    o_ref[...] = row + b2_ref[0, 0]          # b2 is a scalar read from SMEM


def _choose_batch_tile(B, in_size, x_itemsize, h_pad, w_itemsize, tb_target):
    if B <= 128:
        # One full block: block dims equal the array dims (no alignment rules
        # triggered) and splitting such a tiny batch across cores is not useful.
        return B
    # Per-row VMEM cost: double-buffered x rows + the f32 hidden intermediate.
    w1_bytes = 2 * in_size * h_pad * w_itemsize        # (conservatively) double-buffered
    per_row = 2 * in_size * x_itemsize + 4 * h_pad
    tb = (_VMEM_BUDGET_BYTES - w1_bytes) // per_row
    tb = min(int(tb), int(tb_target))
    tb = max(128, (tb // 128) * 128)                   # lane-aligned output rows
    if B <= tb:
        # Guarantee >= 2 grid steps so dimension_semantics=("parallel",) can
        # shard the batch over v7x's two TensorCores.
        tb = max(128, _round_up(-(-B // 2), 128))
    return tb


def single_layer_value_forward(x, w1, b1, w2, b2, *, tb_target=1024, use_bf16=True):
    """x: (B, input_size); w1: (input_size, hidden); b1: (1, hidden); w2: (hidden, 1);
    b2: (1, 1).  Returns (B, 1) float32."""
    B, in_size = x.shape
    hidden = w1.shape[1]
    h_pad = _round_up(hidden, 128)
    w_dtype = jnp.bfloat16 if use_bf16 else jnp.float32
    w_itemsize = jnp.dtype(w_dtype).itemsize
    x_itemsize = jnp.dtype(x.dtype).itemsize

    tb = _choose_batch_tile(B, in_size, x_itemsize, h_pad, w_itemsize, tb_target)
    num_tiles = pl.cdiv(B, tb)
    b_pad = num_tiles * tb

    # Weights only (tiny, one-time): zero-pad hidden to a lane-aligned multiple of
    # 128.  Exact math: padded h columns are relu(0 + 0) = 0 and w2 padding is 0.
    w1_p = jnp.zeros((in_size, h_pad), w_dtype).at[:, :hidden].set(w1.astype(w_dtype))
    b1_p = jnp.zeros((1, h_pad), jnp.float32).at[:, :hidden].set(
        jnp.reshape(b1, (1, hidden)).astype(jnp.float32))
    w2_p = jnp.zeros((1, h_pad), jnp.float32).at[:, :hidden].set(
        jnp.reshape(w2, (1, hidden)).astype(jnp.float32))
    b2_r = jnp.reshape(b2, (1, 1)).astype(jnp.float32)

    out = pl.pallas_call(
        _value_kernel,
        out_shape=jax.ShapeDtypeStruct((1, b_pad), jnp.float32),
        grid_spec=pltpu.PrefetchScalarGridSpec(
            num_scalar_prefetch=0,
            grid=(num_tiles,),
            in_specs=[
                # x streamed tile-by-tile in its original dtype; full feature dim
                # as the block's last dim (== array dim, so no 128 padding here).
                # TODO(synk): sweep pipeline_mode=pl.Buffered(3) on this spec if
                # profiling shows exposed DMA issue latency.
                pl.BlockSpec((tb, in_size), lambda i: (i, 0)),
                pl.BlockSpec((in_size, h_pad), lambda i: (0, 0)),    # w1: VMEM-resident
                pl.BlockSpec((1, h_pad), lambda i: (0, 0)),          # b1: VMEM-resident
                pl.BlockSpec((1, h_pad), lambda i: (0, 0)),          # w2 row: resident
                pl.BlockSpec(memory_space=pltpu.MemorySpace.SMEM),   # b2 scalar
            ],
            # Lane-dense output: each step stores an unmasked (1, tb) f32 row.
            out_specs=pl.BlockSpec((1, tb), lambda i: (0, i)),
        ),
        compiler_params=pltpu.CompilerParams(
            dimension_semantics=("parallel",),      # megacore shards the batch axis
            vmem_limit_bytes=_VMEM_LIMIT_BYTES,
        ),
    )(x, w1_p, b1_p, w2_p, b2_r)

    # Rows past B in the last (partial) tile compute on unspecified data and are
    # never read: slice to the valid batch here.
    return out[0, :B].reshape(B, 1)


def init_params(field_h, field_w, hidden_size, key):
    """Deterministic init mirroring torch.nn.Linear's U(-1/sqrt(fan_in), 1/sqrt(fan_in))."""
    input_size = single_layer_value_input_size(field_h, field_w)
    k1, k2, k3, k4 = jax.random.split(key, 4)
    bound1 = 1.0 / math.sqrt(input_size)
    bound2 = 1.0 / math.sqrt(hidden_size)
    # Stored pre-transposed as (in, out) for the kernel.
    w1 = jax.random.uniform(k1, (input_size, hidden_size), jnp.float32, -bound1, bound1)
    b1 = jax.random.uniform(k2, (1, hidden_size), jnp.float32, -bound1, bound1)
    w2 = jax.random.uniform(k3, (hidden_size, 1), jnp.float32, -bound2, bound2)
    b2 = jax.random.uniform(k4, (1, 1), jnp.float32, -bound2, bound2)
    return w1, b1, w2, b2


def _reference(x, w1, b1, w2, b2, *, bf16_inputs):
    if bf16_inputs:
        x = x.astype(jnp.bfloat16).astype(jnp.float32)
        w1 = w1.astype(jnp.bfloat16).astype(jnp.float32)
    return jnp.maximum(x @ w1 + b1, 0.0) @ w2 + b2


if __name__ == "__main__":
    field_h, field_w = 4, 4
    hidden_size = 32
    batch = 2

    input_size = single_layer_value_input_size(field_h, field_w)  # 484 for 4x4

    key = jax.random.PRNGKey(0)
    kx, kx2, kp = jax.random.split(key, 3)
    x = jax.random.normal(kx, (batch, input_size), dtype=jnp.float32)
    w1, b1, w2, b2 = init_params(field_h, field_w, hidden_size, kp)

    fwd = jax.jit(single_layer_value_forward, static_argnames=("tb_target", "use_bf16"))

    # 1) Default bf16 path, tiny batch (single full block).
    out = jax.block_until_ready(fwd(x, w1, b1, w2, b2))
    assert out.shape == (batch, 1)
    ref_b = _reference(x, w1, b1, w2, b2, bf16_inputs=True)
    assert jnp.allclose(out, ref_b, atol=1e-3, rtol=1e-3)
    ref_f32 = _reference(x, w1, b1, w2, b2, bf16_inputs=False)
    assert jnp.allclose(out, ref_f32, atol=5e-2, rtol=5e-2)  # bf16 input-cast tolerance

    # 2) Opt-out of bf16: near-f32 path.
    out_f32 = jax.block_until_ready(fwd(x, w1, b1, w2, b2, use_bf16=False))
    assert jnp.allclose(out_f32, ref_f32, atol=1e-3, rtol=1e-3)

    # 3) Multi-tile batch exercising the >=2-step grid, partial last block and
    #    lane-dense (1, tb) output stores.
    batch2 = 300
    x2 = jax.random.normal(kx2, (batch2, input_size), dtype=jnp.float32)
    out2 = jax.block_until_ready(fwd(x2, w1, b1, w2, b2))
    assert out2.shape == (batch2, 1)
    ref2 = _reference(x2, w1, b1, w2, b2, bf16_inputs=True)
    assert jnp.allclose(out2, ref2, atol=1e-3, rtol=1e-3)

    print("KERNEL_OK")
</pallas_src>

<mosaic_0001>
module attributes {stable_mosaic.version = 11 : i64} {
  func.func @_value_kernel(%arg0: i32, %arg1: memref<2x484xf32, #tpu.memory_space<vmem>>, %arg2: memref<484x128xbf16, #tpu.memory_space<vmem>>, %arg3: memref<1x128xf32, #tpu.memory_space<vmem>>, %arg4: memref<1x128xf32, #tpu.memory_space<vmem>>, %arg5: memref<1x1xf32, #tpu.memory_space<smem>>, %arg6: memref<1x2xf32, #tpu.memory_space<vmem>>) attributes {dimension_semantics = [#tpu.dimension_semantics<parallel>], iteration_bounds = array<i64: 1>, scalar_prefetch = 0 : i64, scratch_operands = 0 : i64, tpu.core_type = #tpu.core_type<tc>, window_params = [{transform_indices = @transform_0, window_bounds = array<i64: 2, 484>}, {pipeline_mode = #tpu.pipeline_mode<synchronous>, transform_indices = @transform_1, window_bounds = array<i64: 484, 128>}, {pipeline_mode = #tpu.pipeline_mode<synchronous>, transform_indices = @transform_2, window_bounds = array<i64: 1, 128>}, {pipeline_mode = #tpu.pipeline_mode<synchronous>, transform_indices = @transform_3, window_bounds = array<i64: 1, 128>}, {transform_indices = @transform_4, window_bounds = array<i64: 1, 1>}, {transform_indices = @transform_5, window_bounds = array<i64: 1, 2>}]} {
    %c0 = arith.constant 0 : index
    %c0_0 = arith.constant 0 : index
    %0 = vector.load %arg1[%c0, %c0_0] : memref<2x484xf32, #tpu.memory_space<vmem>>, vector<2x484xf32>
    %1 = arith.truncf %0 : vector<2x484xf32> to vector<2x484xbf16>
    %c0_1 = arith.constant 0 : index
    %c0_2 = arith.constant 0 : index
    %2 = vector.load %arg2[%c0_1, %c0_2] : memref<484x128xbf16, #tpu.memory_space<vmem>>, vector<484x128xbf16>
    %cst = arith.constant dense<0.000000e+00> : vector<2x128xf32>
    %3 = tpu.matmul %1, %2, %cst {dimension_numbers = #tpu.dot_dimension_numbers<[1], [0], [0], [1], [0, 0, 1, 1], [], []>} : vector<2x484xbf16>, vector<484x128xbf16>, vector<2x128xf32> -> vector<2x128xf32>
    %c0_3 = arith.constant 0 : index
    %c0_4 = arith.constant 0 : index
    %4 = vector.load %arg3[%c0_3, %c0_4] : memref<1x128xf32, #tpu.memory_space<vmem>>, vector<1x128xf32>
    %5 = vector.broadcast %4 : vector<1x128xf32> to vector<2x128xf32>
    %6 = arith.addf %3, %5 : vector<2x128xf32>
    %cst_5 = arith.constant 0.000000e+00 : f32
    %7 = vector.broadcast %cst_5 : f32 to vector<2x128xf32>
    %8 = arith.maximumf %6, %7 : vector<2x128xf32>
    %c0_6 = arith.constant 0 : index
    %c0_7 = arith.constant 0 : index
    %9 = vector.load %arg4[%c0_6, %c0_7] : memref<1x128xf32, #tpu.memory_space<vmem>>, vector<1x128xf32>
    %cst_8 = arith.constant dense<0.000000e+00> : vector<1x2xf32>
    %10 = tpu.matmul %9, %8, %cst_8 {dimension_numbers = #tpu.dot_dimension_numbers<[1], [1], [0], [0], [0, 0, 1, 0], [], []>} : vector<1x128xf32>, vector<2x128xf32>, vector<1x2xf32> -> vector<1x2xf32>
    %c0_9 = arith.constant 0 : index
    %c0_10 = arith.constant 0 : index
    %11 = memref.load %arg5[%c0_9, %c0_10] : memref<1x1xf32, #tpu.memory_space<smem>>
    %12 = vector.broadcast %11 : f32 to vector<1x2xf32>
    %13 = arith.addf %10, %12 : vector<1x2xf32>
    %c0_11 = arith.constant 0 : index
    %c0_12 = arith.constant 0 : index
    %14 = vector.load %arg6[%c0_11, %c0_12] : memref<1x2xf32, #tpu.memory_space<vmem>>, vector<1x2xf32>
    tpu.vector_store %arg6[%c0_11, %c0_12], %13 {strides = array<i32>} : memref<1x2xf32, #tpu.memory_space<vmem>>, vector<1x2xf32>,
    return
  }
  func.func @transform_0(%arg0: i32) -> (i32, i32) {
    %c0_i32 = arith.constant 0 : i32
    %c0_i32_0 = arith.constant 0 : i32
    return %arg0, %c0_i32 : i32, i32
  }
  func.func @transform_1(%arg0: i32) -> (i32, i32) {
    %c0_i32 = arith.constant 0 : i32
    %c0_i32_0 = arith.constant 0 : i32
    %c0_i32_1 = arith.constant 0 : i32
    return %c0_i32, %c0_i32_0 : i32, i32
  }
  func.func @transform_2(%arg0: i32) -> (i32, i32) {
    %c0_i32 = arith.constant 0 : i32
    %c0_i32_0 = arith.constant 0 : i32
    %c0_i32_1 = arith.constant 0 : i32
    return %c0_i32, %c0_i32_0 : i32, i32
  }
  func.func @transform_3(%arg0: i32) -> (i32, i32) {
    %c0_i32 = arith.constant 0 : i32
    %c0_i32_0 = arith.constant 0 : i32
    %c0_i32_1 = arith.constant 0 : i32
    return %c0_i32, %c0_i32_0 : i32, i32
  }
  func.func @transform_4(%arg0: i32) -> (i32, i32) {
    %c0_i32 = arith.constant 0 : i32
    %c0_i32_0 = arith.constant 0 : i32
    %c0_i32_1 = arith.constant 0 : i32
    return %c0_i32, %c0_i32_0 : i32, i32
  }
  func.func @transform_5(%arg0: i32) -> (i32, i32) {
    %c0_i32 = arith.constant 0 : i32
    %c0_i32_0 = arith.constant 0 : i32
    return %c0_i32, %arg0 : i32, i32
  }
}

</mosaic_0001>

<llo_original>
// kernel: single_layer_value_forward.1
$region0: #{single_layer_value_forward.1}
  #allocation0 [shape = 'u32[]', space=smem, size = 0x4, offset = 0x4, fixed_abs, tag = 'smem constant byte address 0x4 - core index']
  #allocation1 [shape = 'u32[144,128]{1,0:T(1,128)}', space=vmem, size = 0x12000, scoped, tag = 'internal scratch']
  #allocation2 [shape = 'f32[1,1]{1,0:T(1,128)S(6)}', space=smem, size = 0x200, scoped, tag = 'scoped memory for single_layer_value_forward.1']
  %s0 = inlined_call_operand.vmem [shape: f32[2,484], index: 0, kind: input, shape index: {}]
  %s1 = inlined_call_operand.vmem [shape: bf16[484,128], index: 1, kind: input, shape index: {}]
  %s2 = inlined_call_operand.vmem [shape: f32[1,128], index: 2, kind: input, shape index: {}]
  %s3 = inlined_call_operand.vmem [shape: f32[1,128], index: 3, kind: input, shape index: {}]
  %s4 = inlined_call_operand.<no memory space> [shape: f32[1,1], index: 4, kind: input, shape index: {}]
  %s5 = inlined_call_operand.hbm [shape: f32[1,2], index: 5, kind: output, shape index: {}]
  %s6 = sld [smem:[#allocation0]]
  $region30: #{single_layer_value_forward.1} parent=0
    _
  %s8 = ssub.s32 1, %s6
  %s9 = scalar_select 0, %s8, %s6
  %10 = sst [smem:[#allocation2]] %s4
  $region1: #{single_layer_value_forward.1} parent=0
    #allocation3 [shape = 'u8[512]{0}', space=vmem, size = 0x400, scoped, tag = 'output window, operand 0, single buffered']
    #allocation4 [shape = 's32[1]{0}', space=sflag, size = 0x4, scoped, tag = 'scoped memory for single_layer_value_forward.1']
    %11 = vsyncpa [#allocation4], 0
    // Predicated region
    $region2: #{single_layer_value_forward.1} parent=1 // pred_check
      _
    $region3: #{single_layer_value_forward.1} parent=1 // pred_check_branch
      %13 = sbr.rel (0) target = $region5
    $region4: #{single_layer_value_forward.1} parent=1 // pred_region
      _
    $region5: #{single_layer_value_forward.1} parent=1 // pred_fallthru
      _
    // Predicated region
    $region6: #{single_layer_value_forward.1} parent=1 // pred_check
      _
    $region7: #{single_layer_value_forward.1} parent=1 // pred_check_branch
      %15 = sbr.rel (0) target = $region9
    $region8: #{single_layer_value_forward.1} parent=1 // pred_region
      _
    $region9: #{single_layer_value_forward.1} parent=1 // pred_fallthru
      _
    // Predicated region
    $region10: #{single_layer_value_forward.1} parent=1 // pred_check
      _
    $region11: #{single_layer_value_forward.1} parent=1 // pred_check_branch
      %17 = sbr.rel (0) target = $region13
    $region12: #{single_layer_value_forward.1} parent=1 // pred_region
      _
    $region13: #{single_layer_value_forward.1} parent=1 // pred_fallthru
      _
    // Predicated region
    $region14: #{single_layer_value_forward.1} parent=1 // pred_check
      _
    $region15: #{single_layer_value_forward.1} parent=1 // pred_check_branch
      %19 = sbr.rel (0) target = $region17
    $region16: #{single_layer_value_forward.1} parent=1 // pred_region
      _
    $region17: #{single_layer_value_forward.1} parent=1 // pred_fallthru
      _
    // Predicated region
    $region18: #{single_layer_value_forward.1} parent=1 // pred_check
      _
    $region19: #{single_layer_value_forward.1} parent=1 // pred_check_branch
      %21 = sbr.rel (0) target = $region21
    $region20: #{single_layer_value_forward.1} parent=1 // pred_region
      _
    $region21: #{single_layer_value_forward.1} parent=1 // pred_fallthru
      _
    %v23 = vld [vmem:[%s0] sm:$0xff]
    %v25 = vcombine.high %v23, %v23
    %v27 = vunpack.c.l.s4 1983009808
    %v28 = vunpack.c.0.s8 %v27
    %v29 = vlaneseq
    %v30 = vshrl.u32 %v29, 7
    %v31 = vsub.s32 %v28, %v30
    %v32 = vrot.slane %v23, %v31
    %v34 = vunpack.c.l.s4 1983009808
    %v35 = vunpack.c.0.s8 %v34
    %v36 = vlaneseq
    %v37 = vshrl.u32 %v36, 7
    %v38 = vsub.s32 %v35, %v37
    %v39 = vrot.slane %v25, %v38
    %v40 = vcombine.high %v32, %v32
    %v41 = vcombine.high %v39, %v39
    %v46 = vpack.c.bf16 %v32, %v32
    %v47 = vpack.c.bf16 %v40, %v40
    %v48 = vpack.c.bf16 %v39, %v39
    %v49 = vpack.c.bf16 %v41, %v41
    %v50 = vld [vmem:[%s1] sm:$0xf]
    %v51 = vld [vmem:[%s1 + $0x4] sm:$0xf]
    %v52 = vld [vmem:[%s1 + $0x8] sm:$0xf]
    %v53 = vld [vmem:[%s1 + $0xc] sm:$0xf]
    %v54 = vld [vmem:[%s1 + $0x10] sm:$0xf]
    %v55 = vld [vmem:[%s1 + $0x14] sm:$0xf]
    %v56 = vld [vmem:[%s1 + $0x18] sm:$0xf]
    %v57 = vld [vmem:[%s1 + $0x1c] sm:$0xf]
    %v58 = vld [vmem:[%s1 + $0x20] sm:$0xf]
    %v59 = vld [vmem:[%s1 + $0x24] sm:$0xf]
    %v60 = vld [vmem:[%s1 + $0x28] sm:$0xf]
    %v61 = vld [vmem:[%s1 + $0x2c] sm:$0xf]
    %v62 = vld [vmem:[%s1 + $0x30] sm:$0xf]
    %v63 = vld [vmem:[%s1 + $0x34] sm:$0xf]
    %v64 = vld [vmem:[%s1 + $0x38] sm:$0xf]
    %v65 = vld [vmem:[%s1 + $0x3c] sm:$0xf]
    %v66 = vld [vmem:[%s1 + $0x40] sm:$0xf]
    %v67 = vld [vmem:[%s1 + $0x44] sm:$0xf]
    %v68 = vld [vmem:[%s1 + $0x48] sm:$0xf]
    %v69 = vld [vmem:[%s1 + $0x4c] sm:$0xf]
    %v70 = vld [vmem:[%s1 + $0x50] sm:$0xf]
    %v71 = vld [vmem:[%s1 + $0x54] sm:$0xf]
    %v72 = vld [vmem:[%s1 + $0x58] sm:$0xf]
    %v73 = vld [vmem:[%s1 + $0x5c] sm:$0xf]
    %v74 = vld [vmem:[%s1 + $0x60] sm:$0xf]
    %v75 = vld [vmem:[%s1 + $0x64] sm:$0xf]
    %v76 = vld [vmem:[%s1 + $0x68] sm:$0xf]
    %v77 = vld [vmem:[%s1 + $0x6c] sm:$0xf]
    %v78 = vld [vmem:[%s1 + $0x70] sm:$0xf]
    %v79 = vld [vmem:[%s1 + $0x74] sm:$0xf]
    %v80 = vld [vmem:[%s1 + $0x78] sm:$0xf]
    %v81 = vld [vmem:[%s1 + $0x7c] sm:$0xf]
    %v82 = vld [vmem:[%s1 + $0x80] sm:$0xf]
    %v83 = vld [vmem:[%s1 + $0x84] sm:$0xf]
    %v84 = vld [vmem:[%s1 + $0x88] sm:$0xf]
    %v85 = vld [vmem:[%s1 + $0x8c] sm:$0xf]
    %v86 = vld [vmem:[%s1 + $0x90] sm:$0xf]
    %v87 = vld [vmem:[%s1 + $0x94] sm:$0xf]
    %v88 = vld [vmem:[%s1 + $0x98] sm:$0xf]
    %v89 = vld [vmem:[%s1 + $0x9c] sm:$0xf]
    %v90 = vld [vmem:[%s1 + $0xa0] sm:$0xf]
    %v91 = vld [vmem:[%s1 + $0xa4] sm:$0xf]
    %v92 = vld [vmem:[%s1 + $0xa8] sm:$0xf]
    %v93 = vld [vmem:[%s1 + $0xac] sm:$0xf]
    %v94 = vld [vmem:[%s1 + $0xb0] sm:$0xf]
    %v95 = vld [vmem:[%s1 + $0xb4] sm:$0xf]
    %v96 = vld [vmem:[%s1 + $0xb8] sm:$0xf]
    %v97 = vld [vmem:[%s1 + $0xbc] sm:$0xf]
    %v98 = vld [vmem:[%s1 + $0xc0] sm:$0xf]
    %v99 = vld [vmem:[%s1 + $0xc4] sm:$0xf]
    %v100 = vld [vmem:[%s1 + $0xc8] sm:$0xf]
    %v101 = vld [vmem:[%s1 + $0xcc] sm:$0xf]
    %v102 = vld [vmem:[%s1 + $0xd0] sm:$0xf]
    %v103 = vld [vmem:[%s1 + $0xd4] sm:$0xf]
    %v104 = vld [vmem:[%s1 + $0xd8] sm:$0xf]
    %v105 = vld [vmem:[%s1 + $0xdc] sm:$0xf]
    %v106 = vld [vmem:[%s1 + $0xe0] sm:$0xf]
    %v107 = vld [vmem:[%s1 + $0xe4] sm:$0xf]
    %v108 = vld [vmem:[%s1 + $0xe8] sm:$0xf]
    %v109 = vld [vmem:[%s1 + $0xec] sm:$0xf]
    %v110 = vld [vmem:[%s1 + $0xf0] sm:$0x3]
    %v111 = vld [vmem:[%s2] sm:$0x1]
    %v113 = vlaneseq
    %v114 = vshrl.u32 %v113, 7
    %v115 = vsub.s32 0, %v114
    %v116 = vrot.slane %v111, %v115
    %v179 = vunpack.c.l.b16 %v50
    %v180 = vunpack.c.l.b16 %v51
    %v181 = vunpack.c.l.b16 %v52
    %v182 = vunpack.c.l.b16 %v53
    %v183 = vunpack.c.l.b16 %v54
    %v184 = vunpack.c.l.b16 %v55
    %v185 = vunpack.c.l.b16 %v56
    %v186 = vunpack.c.l.b16 %v57
    %v187 = vunpack.c.l.b16 %v58
    %v188 = vunpack.c.l.b16 %v59
    %v189 = vunpack.c.l.b16 %v60
    %v190 = vunpack.c.l.b16 %v61
    %v191 = vunpack.c.l.b16 %v62
    %v192 = vunpack.c.l.b16 %v63
    %v193 = vunpack.c.l.b16 %v64
    %v194 = vunpack.c.l.b16 %v65
    %v195 = vunpack.c.l.b16 %v66
    %v196 = vunpack.c.l.b16 %v67
    %v197 = vunpack.c.l.b16 %v68
    %v198 = vunpack.c.l.b16 %v69
    %v199 = vunpack.c.l.b16 %v70
    %v200 = vunpack.c.l.b16 %v71
    %v201 = vunpack.c.l.b16 %v72
    %v202 = vunpack.c.l.b16 %v73
    %v203 = vunpack.c.l.b16 %v74
    %v204 = vunpack.c.l.b16 %v75
    %v205 = vunpack.c.l.b16 %v76
    %v206 = vunpack.c.l.b16 %v77
    %v207 = vunpack.c.l.b16 %v78
    %v208 = vunpack.c.l.b16 %v79
    %v209 = vunpack.c.l.b16 %v80
    %v210 = vunpack.c.l.b16 %v81
    %v211 = vunpack.c.l.b16 %v82
    %v212 = vunpack.c.l.b16 %v83
    %v213 = vunpack.c.l.b16 %v84
    %v214 = vunpack.c.l.b16 %v85
    %v215 = vunpack.c.l.b16 %v86
    %v216 = vunpack.c.l.b16 %v87
    %v217 = vunpack.c.l.b16 %v88
    %v218 = vunpack.c.l.b16 %v89
    %v219 = vunpack.c.l.b16 %v90
    %v220 = vunpack.c.l.b16 %v91
    %v221 = vunpack.c.l.b16 %v92
    %v222 = vunpack.c.l.b16 %v93
    %v223 = vunpack.c.l.b16 %v94
    %v224 = vunpack.c.l.b16 %v95
    %v225 = vunpack.c.l.b16 %v96
    %v226 = vunpack.c.l.b16 %v97
    %v227 = vunpack.c.l.b16 %v98
    %v228 = vunpack.c.l.b16 %v99
    %v229 = vunpack.c.l.b16 %v100
    %v230 = vunpack.c.l.b16 %v101
    %v231 = vunpack.c.l.b16 %v102
    %v232 = vunpack.c.l.b16 %v103
    %v233 = vunpack.c.l.b16 %v104
    %v234 = vunpack.c.l.b16 %v105
    %v235 = vunpack.c.l.b16 %v106
    %v236 = vunpack.c.l.b16 %v107
    %v237 = vunpack.c.l.b16 %v108
    %v238 = vunpack.c.l.b16 %v109
    %v239 = vunpack.c.l.b16 %v110
    %v240 = vpack.c.b16 %v180, %v179
    %v241 = vpack.c.b16 %v182, %v181
    %v242 = vpack.c.b16 %v184, %v183
    %v243 = vpack.c.b16 %v186, %v185
    %v244 = vpack.c.b16 %v188, %v187
    %v245 = vpack.c.b16 %v190, %v189
    %v246 = vpack.c.b16 %v192, %v191
    %v247 = vpack.c.b16 %v194, %v193
    %v248 = vpack.c.b16 %v196, %v195
    %v249 = vpack.c.b16 %v198, %v197
    %v250 = vpack.c.b16 %v200, %v199
    %v251 = vpack.c.b16 %v202, %v201
    %v252 = vpack.c.b16 %v204, %v203
    %v253 = vpack.c.b16 %v206, %v205
    %v254 = vpack.c.b16 %v208, %v207
    %v255 = vpack.c.b16 %v210, %v209
    %v256 = vpack.c.b16 %v212, %v211
    %v257 = vpack.c.b16 %v214, %v213
    %v258 = vpack.c.b16 %v216, %v215
    %v259 = vpack.c.b16 %v218, %v217
    %v260 = vpack.c.b16 %v220, %v219
    %v261 = vpack.c.b16 %v222, %v221
    %v262 = vpack.c.b16 %v224, %v223
    %v263 = vpack.c.b16 %v226, %v225
    %v264 = vpack.c.b16 %v228, %v227
    %v265 = vpack.c.b16 %v230, %v229
    %v266 = vpack.c.b16 %v232, %v231
    %v267 = vpack.c.b16 %v234, %v233
    %v268 = vpack.c.b16 %v236, %v235
    %v269 = vpack.c.b16 %v238, %v237
    %v270 = vpack.c.b16 %v239, %v239
    %vm301 = vcmask 818176
    %v303 = vsel %vm301, %v49, 0
    %vm305 = vcmask 1041408
    %v307 = vsel %vm305, %v270, 0
    %309 = vmatprep.subr.bf16.mxu0 0
    %310 = vmatpush1.bf16.msra.mxu0 %v247
    %311 = vmatprep.subr.bf16.mxu0 0
    %312 = vmatpush1.bf16.msra.mxu0 %v246
    %313 = vmatprep.subr.bf16.mxu0 0
    %314 = vmatpush1.bf16.msra.mxu0 %v245
    %315 = vmatprep.subr.bf16.mxu0 0
    %316 = vmatpush1.bf16.msra.mxu0 %v244
    %317 = vmatprep.subr.bf16.mxu0 0
    %318 = vmatpush1.bf16.msra.mxu0 %v243
    %319 = vmatprep.subr.bf16.mxu0 0
    %320 = vmatpush1.bf16.msra.mxu0 %v242
    %321 = vmatprep.subr.bf16.mxu0 0
    %322 = vmatpush1.bf16.msra.mxu0 %v241
    %323 = vmatprep.subr.bf16.mxu0 0
    %324 = vmatpush1.bf16.msra.mxu0 %v240
    %325 = vmatprep.subr.bf16.mxu0 0
    %326 = vmatpush2.bf16.msra.mxu0 %v255
    %327 = vmatprep.subr.bf16.mxu0 0
    %328 = vmatpush2.bf16.msra.mxu0 %v254
    %329 = vmatprep.subr.bf16.mxu0 0
    %330 = vmatpush2.bf16.msra.mxu0 %v253
    %331 = vmatprep.subr.bf16.mxu0 0
    %332 = vmatpush2.bf16.msra.mxu0 %v252
    %333 = vmatprep.subr.bf16.mxu0 0
    %334 = vmatpush2.bf16.msra.mxu0 %v251
    %335 = vmatprep.subr.bf16.mxu0 0
    %336 = vmatpush2.bf16.msra.mxu0 %v250
    %337 = vmatprep.subr.bf16.mxu0 0
    %338 = vmatpush2.bf16.msra.mxu0 %v249
    %339 = vmatprep.subr.bf16.mxu0 0
    %340 = vmatpush2.bf16.msra.mxu0 %v248
    %341 = vmatprep.mubr.bf16.mxu0 %v47
    %342 = vmatmul.mubr.bf16.gmra.mxu0 %v46
    %v343 = vpop.f32.mrf.mxu0
    %v344 = vadd.f32 %v116, %v343
    %v345 = vpop.f32.mrf.mxu0
    %v346 = vpop.f32.mrf.mxu0
    %v347 = vpop.f32.mrf.mxu0
    %348 = vdwg.mxu0
    %349 = vmatprep.subr.bf16.mxu0 0
    %350 = vmatpush1.bf16.msra.mxu0 %v263
    %351 = vmatprep.subr.bf16.mxu0 0
    %352 = vmatpush1.bf16.msra.mxu0 %v262
    %353 = vmatprep.subr.bf16.mxu0 0
    %354 = vmatpush1.bf16.msra.mxu0 %v261
    %355 = vmatprep.subr.bf16.mxu0 0
    %356 = vmatpush1.bf16.msra.mxu0 %v260
    %357 = vmatprep.subr.bf16.mxu0 0
    %358 = vmatpush1.bf16.msra.mxu0 %v259
    %359 = vmatprep.subr.bf16.mxu0 0
    %360 = vmatpush1.bf16.msra.mxu0 %v258
    %361 = vmatprep.subr.bf16.mxu0 0
    %362 = vmatpush1.bf16.msra.mxu0 %v257
    %363 = vmatprep.subr.bf16.mxu0 0
    %364 = vmatpush1.bf16.msra.mxu0 %v256
    %365 = vmatprep.subr.bf16.mxu0 0
    %366 = vmatpush2.bf16.msra.mxu0 0
    %367 = vmatprep.subr.bf16.mxu0 0
    %368 = vmatpush2.bf16.msra.mxu0 %v307
    %369 = vmatprep.subr.bf16.mxu0 0
    %370 = vmatpush2.bf16.msra.mxu0 %v269
    %371 = vmatprep.subr.bf16.mxu0 0
    %372 = vmatpush2.bf16.msra.mxu0 %v268
    %373 = vmatprep.subr.bf16.mxu0 0
    %374 = vmatpush2.bf16.msra.mxu0 %v267
    %375 = vmatprep.subr.bf16.mxu0 0
    %376 = vmatpush2.bf16.msra.mxu0 %v266
    %377 = vmatprep.subr.bf16.mxu0 0
    %378 = vmatpush2.bf16.msra.mxu0 %v265
    %379 = vmatprep.subr.bf16.mxu0 0
    %380 = vmatpush2.bf16.msra.mxu0 %v264
    %381 = vmatprep.mubr.bf16.mxu0 %v303
    %382 = vmatmul.mubr.bf16.gmra.mxu0 %v48
    %v383 = vpop.f32.mrf.mxu0
    %v384 = vadd.f32 %v344, %v383
    %v385 = vpop.f32.mrf.mxu0
    %v386 = vpop.f32.mrf.mxu0
    %v387 = vpop.f32.mrf.mxu0
    %388 = vdwg.mxu0
    %v389 = vmax.f32 %v384, 0.0
    %v390 = vld [vmem:[%s3] sm:$0x1]
    %s391 = sld [smem:[#allocation2]]
    %v392 = vstv %s391
    %393 = vmatprep.subr.mxu0 0.0
    %394 = vmatpush1.xpose.msra.mxu0 0.0
    %395 = vmatprep.subr.mxu0 0.0
    %396 = vmatpush1.xpose.msra.mxu0 0.0
    %397 = vmatprep.subr.mxu0 0.0
    %398 = vmatpush1.xpose.msra.mxu0 0.0
    %399 = vmatprep.subr.mxu0 0.0
    %400 = vmatpush1.xpose.msra.mxu0 0.0
    %401 = vmatprep.subr.mxu0 0.0
    %402 = vmatpush1.xpose.msra.mxu0 0.0
    %403 = vmatprep.subr.mxu0 0.0
    %404 = vmatpush1.xpose.msra.mxu0 0.0
    %405 = vmatprep.subr.mxu0 0.0
    %406 = vmatpush1.xpose.msra.mxu0 0.0
    %407 = vmatprep.subr.mxu0 0.0
    %408 = vmatpush1.xpose.msra.mxu0 0.0
    %409 = vmatprep.subr.mxu0 0.0
    %410 = vmatpush1.xpose.msra.mxu0 0.0
    %411 = vmatprep.subr.mxu0 0.0
    %412 = vmatpush1.xpose.msra.mxu0 0.0
    %413 = vmatprep.subr.mxu0 0.0
    %414 = vmatpush1.xpose.msra.mxu0 0.0
    %415 = vmatprep.subr.mxu0 0.0
    %416 = vmatpush1.xpose.msra.mxu0 0.0
    %417 = vmatprep.subr.mxu0 0.0
    %418 = vmatpush1.xpose.msra.mxu0 0.0
    %419 = vmatprep.subr.mxu0 0.0
    %420 = vmatpush1.xpose.msra.mxu0 0.0
    %421 = vmatprep.subr.mxu0 0.0
    %422 = vmatpush1.xpose.msra.mxu0 0.0
    %423 = vmatprep.subr.mxu0 0.0
    %424 = vmatpush1.xpose.msra.mxu0 %v389
    %425 = vmatprep.subr.mxu0 0.0
    %426 = vmatpush2.xpose.msra.mxu0 0.0
    %427 = vmatprep.subr.mxu0 0.0
    %428 = vmatpush2.xpose.msra.mxu0 0.0
    %429 = vmatprep.subr.mxu0 0.0
    %430 = vmatpush2.xpose.msra.mxu0 0.0
    %431 = vmatprep.subr.mxu0 0.0
    %432 = vmatpush2.xpose.msra.mxu0 0.0
    %433 = vmatprep.subr.mxu0 0.0
    %434 = vmatpush2.xpose.msra.mxu0 0.0
    %435 = vmatprep.subr.mxu0 0.0
    %436 = vmatpush2.xpose.msra.mxu0 0.0
    %437 = vmatprep.subr.mxu0 0.0
    %438 = vmatpush2.xpose.msra.mxu0 0.0
    %439 = vmatprep.subr.mxu0 0.0
    %440 = vmatpush2.xpose.msra.mxu0 0.0
    %441 = vmatprep.subr.mxu0 0.0
    %442 = vmatpush2.xpose.msra.mxu0 0.0
    %443 = vmatprep.subr.mxu0 0.0
    %444 = vmatpush2.xpose.msra.mxu0 0.0
    %445 = vmatprep.subr.mxu0 0.0
    %446 = vmatpush2.xpose.msra.mxu0 0.0
    %447 = vmatprep.subr.mxu0 0.0
    %448 = vmatpush2.xpose.msra.mxu0 0.0
    %449 = vmatprep.subr.mxu0 0.0
    %450 = vmatpush2.xpose.msra.mxu0 0.0
    %451 = vmatprep.subr.mxu0 0.0
    %452 = vmatpush2.xpose.msra.mxu0 0.0
    %453 = vmatprep.subr.mxu0 0.0
    %454 = vmatpush2.xpose.msra.mxu0 0.0
    %455 = vmatprep.subr.mxu0 0.0
    %456 = vmatpush2.xpose.msra.mxu0 0.0
    %457 = vmatprep.mubr.f32.mxu0 0.0
    %458 = vmatmul.mubr.f32.gmra.mxu0 %v390
    %v459 = vpop.f32.mrf.mxu0
    %v460 = vadd.f32 %v392, %v459
    %v461 = vpop.f32.mrf.mxu0
    %462 = vdwg.mxu0
    %vm463 = vcmask 8192
    %464 = vst.msk [vmem:[#allocation3] sm:$0x1] %vm463, %v460
    // Predicated region
    $region22: #{single_layer_value_forward.1} parent=1 // pred_check
      _
    $region23: #{single_layer_value_forward.1} parent=1 // pred_check_branch
      %466 = sbr.rel (0) target = $region25
    $region24: #{single_layer_value_forward.1} parent=1 // pred_region
      %s468 = ssub.s32 16, 16
      %469 = vsyncadd [#allocation4], %s468
      %s471 = sshll.u32 [#allocation3], 4
      %s472 = int_to_ptr.vmem [resolvable:$true] %s471
      %474 = dma.vmem_to_hbm [thread:$0]  %s472, 16, %s5, [#allocation4]
    $region25: #{single_layer_value_forward.1} parent=1 // pred_fallthru
      _
    // Predicated region
    $region26: #{single_layer_value_forward.1} parent=1 // pred_check
      _
    $region27: #{single_layer_value_forward.1} parent=1 // pred_check_branch
      %476 = sbr.rel (0) target = $region29
    $region28: #{single_layer_value_forward.1} parent=1 // pred_region
      %477 = dma.done [#allocation4], 16
    $region29: #{single_layer_value_forward.1} parent=1 // pred_fallthru
      _
    %478 = vsyncpa [#allocation4], 1

</llo_original>
